<compile_context>
chip_gen: v7x
topology: tpu7x:2x2x1
jax: 0.10.0
libtpu: 0.0.40
codegen_flags: <defaults>
</compile_context>

<pallas_src>
import functools

import jax
import jax.numpy as jnp
from jax import lax
from jax.experimental import pallas as pl
from jax.experimental.pallas import tpu as pltpu


def _round_up(v, m):
    return ((v + m - 1) // m) * m


def _mdn_fused_kernel(x_ref, w_ref, b_ref, out_ref, *, g, go):
    """One batch tile: y = x @ [Wpi|Wmu|Wsig|0] + [bpi|bmu|bsig|0], then apply
    softmax on the pi columns, exp on the sigma columns, identity elsewhere."""
    x = x_ref[...]                                                   # (TB, D)
    y = jnp.dot(x, w_ref[...],
                preferred_element_type=jnp.float32) + b_ref[...]     # (TB, Npad)

    col = lax.broadcasted_iota(jnp.int32, y.shape, dimension=1)
    is_pi = col < g
    is_sigma = (col >= g + go) & (col < g + 2 * go)

    # Row max over the pi columns only (large finite sentinel, no inf math).
    m = jnp.max(jnp.where(is_pi, y, jnp.float32(-3.0e38)),
                axis=-1, keepdims=True)                              # (TB, 1)

    # Single full-width exp: pi columns are max-shifted (softmax numerator),
    # sigma columns use exp(y) directly, other columns are discarded below.
    exp_all = jnp.exp(jnp.where(is_pi, y - m, y))                    # (TB, Npad)
    denom = jnp.sum(jnp.where(is_pi, exp_all, 0.0),
                    axis=-1, keepdims=True)                          # (TB, 1)
    pi_vals = exp_all * (1.0 / denom)          # exact reciprocal; (TB,1) cost

    # Single lane-dense store: pi -> softmax, sigma -> exp, mu/pad -> identity.
    out_ref[...] = jnp.where(is_pi, pi_vals,
                             jnp.where(is_sigma, exp_all, y))


def _choose_batch_tile(b, block_b):
    """Sublane-aligned batch tile; >= 2 grid steps whenever B spans more than
    one minimal tile (so v7x's two TensorCores both get work)."""
    b_aligned = _round_up(max(b, 1), 8)
    if b_aligned <= 8:
        return b_aligned
    half = _round_up((b_aligned + 1) // 2, 8)
    return max(8, min(block_b, half))


@functools.partial(jax.jit,
                   static_argnames=("n_gaussians", "output_size", "block_b"))
def mdn_forward(x, params, *, n_gaussians, output_size, block_b=8192):
    """x: (1, B, input_size) float32.  Returns (pi, mu, sigma) matching the
    PyTorch MDN.forward semantics."""
    x2 = jnp.squeeze(x, axis=0).astype(jnp.float32)                  # (B, D)
    B, D = x2.shape
    G = n_gaussians
    GO = n_gaussians * output_size
    n_out = G + 2 * GO
    n_pad = _round_up(n_out, 128)                                    # lane-dense

    wpi, bpi, wmu, bmu, wsig, bsig = params
    # One-time fusion of the three linears (folded into the jit).
    w = jnp.concatenate([wpi, wmu, wsig], axis=1)                    # (D, n_out)
    b = jnp.concatenate([bpi.reshape(1, -1), bmu.reshape(1, -1),
                         bsig.reshape(1, -1)], axis=1)               # (1, n_out)
    if n_pad != n_out:
        w = jnp.pad(w, ((0, 0), (0, n_pad - n_out)))
        b = jnp.pad(b, ((0, 0), (0, n_pad - n_out)))

    tb = _choose_batch_tile(B, block_b)
    bp = _round_up(B, tb)
    if bp != B:
        # TODO(synk): for tile-unaligned B this is an extra HBM pass over x;
        # a ragged last tile with masked stores would avoid it.
        x2 = jnp.pad(x2, ((0, bp - B), (0, 0)))
    grid = (bp // tb,)

    kernel = functools.partial(_mdn_fused_kernel, g=G, go=GO)
    fused = pl.pallas_call(
        kernel,
        out_shape=jax.ShapeDtypeStruct((bp, n_pad), jnp.float32),
        grid=grid,
        in_specs=[
            pl.BlockSpec((tb, D), lambda i: (i, 0)),      # x: tiled over batch
            pl.BlockSpec((D, n_pad), lambda i: (0, 0)),   # fused W: VMEM-resident
            pl.BlockSpec((1, n_pad), lambda i: (0, 0)),   # fused b: VMEM-resident
        ],
        out_specs=pl.BlockSpec((tb, n_pad), lambda i: (i, 0)),
        compiler_params=pltpu.CompilerParams(
            dimension_semantics=("parallel",)),
    )(x2, w, b)

    fused = fused[:B]                                                # drop batch pad
    pi = fused[:, :G]
    mu = fused[:, G:G + GO].reshape(-1, G, output_size)
    sigma = fused[:, G + GO:G + 2 * GO].reshape(-1, G, output_size)
    return pi, mu, sigma


def init_mdn_params(key, input_size, n_gaussians, output_size):
    """Deterministic init mimicking nn.Linear default (uniform +-1/sqrt(fan_in)).
    Weights stored transposed: (in_features, out_features)."""
    bound = 1.0 / jnp.sqrt(jnp.float32(input_size))
    ks = jax.random.split(key, 6)
    G, GO = n_gaussians, n_gaussians * output_size
    wpi = jax.random.uniform(ks[0], (input_size, G), jnp.float32, -bound, bound)
    bpi = jax.random.uniform(ks[1], (1, G), jnp.float32, -bound, bound)
    wmu = jax.random.uniform(ks[2], (input_size, GO), jnp.float32, -bound, bound)
    bmu = jax.random.uniform(ks[3], (1, GO), jnp.float32, -bound, bound)
    wsig = jax.random.uniform(ks[4], (input_size, GO), jnp.float32, -bound, bound)
    bsig = jax.random.uniform(ks[5], (1, GO), jnp.float32, -bound, bound)
    return (wpi, bpi, wmu, bmu, wsig, bsig)


if __name__ == "__main__":
    input_size = 32
    output_size = 8
    n_gaussians = 4
    batch = 8

    key = jax.random.PRNGKey(0)
    k_x, k_p = jax.random.split(key)
    x = jax.random.normal(k_x, (1, batch, input_size), dtype=jnp.float32)
    params = init_mdn_params(k_p, input_size, n_gaussians, output_size)

    pi, mu, sigma = mdn_forward(x, params, n_gaussians=n_gaussians,
                                output_size=output_size)
    jax.block_until_ready((pi, mu, sigma))

    # Reference check in plain JAX.
    x2 = jnp.squeeze(x, 0)
    wpi, bpi, wmu, bmu, wsig, bsig = params
    pi_ref = jax.nn.softmax(x2 @ wpi + bpi, axis=1)
    mu_ref = (x2 @ wmu + bmu).reshape(-1, n_gaussians, output_size)
    sigma_ref = jnp.exp(x2 @ wsig + bsig).reshape(-1, n_gaussians, output_size)
    assert pi.shape == (batch, n_gaussians)
    assert mu.shape == (batch, n_gaussians, output_size)
    assert sigma.shape == (batch, n_gaussians, output_size)
    assert jnp.allclose(pi, pi_ref, rtol=1e-4, atol=1e-5)
    assert jnp.allclose(mu, mu_ref, rtol=1e-4, atol=1e-5)
    assert jnp.allclose(sigma, sigma_ref, rtol=1e-4, atol=1e-5)

    print("KERNEL_OK")
</pallas_src>

<mosaic_0001>
module attributes {stable_mosaic.version = 11 : i64} {
  func.func @_mdn_fused_kernel(%arg0: i32, %arg1: memref<8x32xf32, #tpu.memory_space<vmem>>, %arg2: memref<32x128xf32, #tpu.memory_space<vmem>>, %arg3: memref<1x128xf32, #tpu.memory_space<vmem>>, %arg4: memref<8x128xf32, #tpu.memory_space<vmem>>) attributes {dimension_semantics = [#tpu.dimension_semantics<parallel>], iteration_bounds = array<i64: 1>, scalar_prefetch = 0 : i64, scratch_operands = 0 : i64, tpu.core_type = #tpu.core_type<tc>, window_params = [{transform_indices = @transform_0, window_bounds = array<i64: 8, 32>}, {pipeline_mode = #tpu.pipeline_mode<synchronous>, transform_indices = @transform_1, window_bounds = array<i64: 32, 128>}, {pipeline_mode = #tpu.pipeline_mode<synchronous>, transform_indices = @transform_2, window_bounds = array<i64: 1, 128>}, {transform_indices = @transform_3, window_bounds = array<i64: 8, 128>}]} {
    %c0 = arith.constant 0 : index
    %c0_0 = arith.constant 0 : index
    %0 = vector.load %arg1[%c0, %c0_0] : memref<8x32xf32, #tpu.memory_space<vmem>>, vector<8x32xf32>
    %c0_1 = arith.constant 0 : index
    %c0_2 = arith.constant 0 : index
    %1 = vector.load %arg2[%c0_1, %c0_2] : memref<32x128xf32, #tpu.memory_space<vmem>>, vector<32x128xf32>
    %cst = arith.constant dense<0.000000e+00> : vector<8x128xf32>
    %2 = tpu.matmul %0, %1, %cst {dimension_numbers = #tpu.dot_dimension_numbers<[1], [0], [0], [1], [0, 0, 1, 1], [], []>} : vector<8x32xf32>, vector<32x128xf32>, vector<8x128xf32> -> vector<8x128xf32>
    %c0_3 = arith.constant 0 : index
    %c0_4 = arith.constant 0 : index
    %3 = vector.load %arg3[%c0_3, %c0_4] : memref<1x128xf32, #tpu.memory_space<vmem>>, vector<1x128xf32>
    %4 = vector.broadcast %3 : vector<1x128xf32> to vector<8x128xf32>
    %5 = arith.addf %2, %4 : vector<8x128xf32>
    %6 = tpu.iota {dimensions = array<i32: 1>} : vector<8x128xi32>
    %c4_i32 = arith.constant 4 : i32
    %7 = vector.broadcast %c4_i32 : i32 to vector<8x128xi32>
    %8 = arith.cmpi slt, %6, %7 : vector<8x128xi32>
    %c36_i32 = arith.constant 36 : i32
    %9 = vector.broadcast %c36_i32 : i32 to vector<8x128xi32>
    %10 = arith.cmpi sge, %6, %9 : vector<8x128xi32>
    %c68_i32 = arith.constant 68 : i32
    %11 = vector.broadcast %c68_i32 : i32 to vector<8x128xi32>
    %12 = arith.cmpi slt, %6, %11 : vector<8x128xi32>
    %13 = arith.andi %10, %12 : vector<8x128xi1>
    %cst_5 = arith.constant -3.000000e+38 : f32
    %14 = vector.broadcast %cst_5 : f32 to vector<8x128xf32>
    %15 = arith.select %8, %5, %14 : vector<8x128xi1>, vector<8x128xf32>
    %cst_6 = arith.constant dense<0xFF800000> : vector<8xf32>
    %16 = vector.multi_reduction <maximumf>, %15, %cst_6 [1] : vector<8x128xf32> to vector<8xf32>
    %17 = vector.shape_cast %16 : vector<8xf32> to vector<8x1xf32>
    %18 = vector.broadcast %17 : vector<8x1xf32> to vector<8x128xf32>
    %19 = arith.subf %5, %18 : vector<8x128xf32>
    %20 = arith.select %8, %19, %5 : vector<8x128xi1>, vector<8x128xf32>
    %21 = math.exp %20 : vector<8x128xf32>
    %cst_7 = arith.constant 0.000000e+00 : f32
    %22 = vector.broadcast %cst_7 : f32 to vector<8x128xf32>
    %23 = arith.select %8, %21, %22 : vector<8x128xi1>, vector<8x128xf32>
    %cst_8 = arith.constant dense<0.000000e+00> : vector<8xf32>
    %24 = vector.multi_reduction <add>, %23, %cst_8 [1] : vector<8x128xf32> to vector<8xf32>
    %25 = vector.shape_cast %24 : vector<8xf32> to vector<8x1xf32>
    %cst_9 = arith.constant 1.000000e+00 : f32
    %26 = vector.broadcast %cst_9 : f32 to vector<8x1xf32>
    %27 = arith.divf %26, %25 : vector<8x1xf32>
    %28 = vector.broadcast %27 : vector<8x1xf32> to vector<8x128xf32>
    %29 = arith.mulf %21, %28 : vector<8x128xf32>
    %30 = arith.select %13, %21, %5 : vector<8x128xi1>, vector<8x128xf32>
    %31 = arith.select %8, %29, %30 : vector<8x128xi1>, vector<8x128xf32>
    %c0_10 = arith.constant 0 : index
    %c0_11 = arith.constant 0 : index
    %32 = vector.load %arg4[%c0_10, %c0_11] : memref<8x128xf32, #tpu.memory_space<vmem>>, vector<8x128xf32>
    tpu.vector_store %arg4[%c0_10, %c0_11], %31 {strides = array<i32>} : memref<8x128xf32, #tpu.memory_space<vmem>>, vector<8x128xf32>,
    return
  }
  func.func @transform_0(%arg0: i32) -> (i32, i32) {
    %c0_i32 = arith.constant 0 : i32
    %c0_i32_0 = arith.constant 0 : i32
    return %arg0, %c0_i32 : i32, i32
  }
  func.func @transform_1(%arg0: i32) -> (i32, i32) {
    %c0_i32 = arith.constant 0 : i32
    %c0_i32_0 = arith.constant 0 : i32
    %c0_i32_1 = arith.constant 0 : i32
    return %c0_i32, %c0_i32_0 : i32, i32
  }
  func.func @transform_2(%arg0: i32) -> (i32, i32) {
    %c0_i32 = arith.constant 0 : i32
    %c0_i32_0 = arith.constant 0 : i32
    %c0_i32_1 = arith.constant 0 : i32
    return %c0_i32, %c0_i32_0 : i32, i32
  }
  func.func @transform_3(%arg0: i32) -> (i32, i32) {
    %c0_i32 = arith.constant 0 : i32
    %c0_i32_0 = arith.constant 0 : i32
    return %arg0, %c0_i32 : i32, i32
  }
}

</mosaic_0001>

<llo_original>
// kernel: mdn_forward.1
$region0: #{mdn_forward.1}
  #allocation0 [shape = 'u32[]', space=smem, size = 0x4, offset = 0x4, fixed_abs, tag = 'smem constant byte address 0x4 - core index']
  #allocation1 [shape = 'u32[144,128]{1,0:T(1,128)}', space=vmem, size = 0x12000, scoped, tag = 'internal scratch']
  %s0 = inlined_call_operand.vmem [shape: f32[8,32], index: 0, kind: input, shape index: {}]
  %s1 = inlined_call_operand.vmem [shape: f32[32,128], index: 1, kind: input, shape index: {}]
  %s2 = inlined_call_operand.vmem [shape: f32[1,128], index: 2, kind: input, shape index: {}]
  %s3 = inlined_call_operand.vmem [shape: f32[8,128], index: 3, kind: output, shape index: {}]
  %s4 = sld [smem:[#allocation0]]
  $region22: #{mdn_forward.1} parent=0
    _
  %s6 = ssub.s32 1, %s4
  %s7 = scalar_select 0, %s6, %s4
  // Predicated region
  $region2: #{mdn_forward.1} parent=0 // pred_check
    _
  $region3: #{mdn_forward.1} parent=0 // pred_check_branch
    %9 = sbr.rel (0) target = $region5
  $region4: #{mdn_forward.1} parent=0 // pred_region
    _
  $region5: #{mdn_forward.1} parent=0 // pred_fallthru
    _
  // Predicated region
  $region6: #{mdn_forward.1} parent=0 // pred_check
    _
  $region7: #{mdn_forward.1} parent=0 // pred_check_branch
    %11 = sbr.rel (0) target = $region9
  $region8: #{mdn_forward.1} parent=0 // pred_region
    _
  $region9: #{mdn_forward.1} parent=0 // pred_fallthru
    _
  // Predicated region
  $region10: #{mdn_forward.1} parent=0 // pred_check
    _
  $region11: #{mdn_forward.1} parent=0 // pred_check_branch
    %13 = sbr.rel (0) target = $region13
  $region12: #{mdn_forward.1} parent=0 // pred_region
    _
  $region13: #{mdn_forward.1} parent=0 // pred_fallthru
    _
  %v14 = vld [vmem:[%s0] sm:$0xff]
  %v15 = vld [vmem:[%s1] sm:$0xff]
  %v16 = vld [vmem:[%s1 + $0x8] sm:$0xff]
  %v17 = vld [vmem:[%s1 + $0x10] sm:$0xff]
  %v18 = vld [vmem:[%s1 + $0x18] sm:$0xff]
  %v19 = vld [vmem:[%s2] sm:$0x1]
  %v21 = vlaneseq
  %v22 = vshrl.u32 %v21, 7
  %v23 = vsub.s32 0, %v22
  %v24 = vrot.slane %v19, %v23
  %vm26 = vcmask 261120
  %v28 = vsel %vm26, %v14, 0
  %30 = vmatprep.subr.mxu0 0.0
  %31 = vmatpush1.msra.mxu0 %v15
  %32 = vmatprep.subr.mxu0 0.0
  %33 = vmatpush1.msra.mxu0 %v16
  %34 = vmatprep.subr.mxu0 0.0
  %35 = vmatpush1.msra.mxu0 %v17
  %36 = vmatprep.subr.mxu0 0.0
  %37 = vmatpush1.msra.mxu0 %v18
  %38 = vmatprep.subr.mxu0 0.0
  %39 = vmatpush1.msra.mxu0 0.0
  %40 = vmatprep.subr.mxu0 0.0
  %41 = vmatpush1.msra.mxu0 0.0
  %42 = vmatprep.subr.mxu0 0.0
  %43 = vmatpush1.msra.mxu0 0.0
  %44 = vmatprep.subr.mxu0 0.0
  %45 = vmatpush1.msra.mxu0 0.0
  %46 = vmatprep.subr.mxu0 0.0
  %47 = vmatpush1.msra.mxu0 0.0
  %48 = vmatprep.subr.mxu0 0.0
  %49 = vmatpush1.msra.mxu0 0.0
  %50 = vmatprep.subr.mxu0 0.0
  %51 = vmatpush1.msra.mxu0 0.0
  %52 = vmatprep.subr.mxu0 0.0
  %53 = vmatpush1.msra.mxu0 0.0
  %54 = vmatprep.subr.mxu0 0.0
  %55 = vmatpush1.msra.mxu0 0.0
  %56 = vmatprep.subr.mxu0 0.0
  %57 = vmatpush1.msra.mxu0 0.0
  %58 = vmatprep.subr.mxu0 0.0
  %59 = vmatpush1.msra.mxu0 0.0
  %60 = vmatprep.subr.mxu0 0.0
  %61 = vmatpush1.msra.mxu0 0.0
  %62 = vmatprep.subr.mxu0 0.0
  %63 = vmatpush1.msra.mxu0 0.0
  %64 = vmatprep.subr.mxu0 0.0
  %65 = vmatpush1.msra.mxu0 0.0
  %66 = vmatprep.subr.mxu0 0.0
  %67 = vmatpush1.msra.mxu0 0.0
  %68 = vmatprep.subr.mxu0 0.0
  %69 = vmatpush1.msra.mxu0 0.0
  %70 = vmatprep.subr.mxu0 0.0
  %71 = vmatpush1.msra.mxu0 0.0
  %72 = vmatprep.subr.mxu0 0.0
  %73 = vmatpush1.msra.mxu0 0.0
  %74 = vmatprep.subr.mxu0 0.0
  %75 = vmatpush1.msra.mxu0 0.0
  %76 = vmatprep.subr.mxu0 0.0
  %77 = vmatpush1.msra.mxu0 0.0
  %78 = vmatprep.subr.mxu0 0.0
  %79 = vmatpush1.msra.mxu0 0.0
  %80 = vmatprep.subr.mxu0 0.0
  %81 = vmatpush1.msra.mxu0 0.0
  %82 = vmatprep.subr.mxu0 0.0
  %83 = vmatpush1.msra.mxu0 0.0
  %84 = vmatprep.subr.mxu0 0.0
  %85 = vmatpush1.msra.mxu0 0.0
  %86 = vmatprep.subr.mxu0 0.0
  %87 = vmatpush1.msra.mxu0 0.0
  %88 = vmatprep.subr.mxu0 0.0
  %89 = vmatpush1.msra.mxu0 0.0
  %90 = vmatprep.subr.mxu0 0.0
  %91 = vmatpush1.msra.mxu0 0.0
  %92 = vmatprep.subr.mxu0 0.0
  %93 = vmatpush1.msra.mxu0 0.0
  %94 = vmatprep.mubr.f32.mxu0 0.0
  %95 = vmatmul.mubr.f32.gmra.mrb[0].mxu0 %v28
  %v96 = vpop.f32.mrb[0].mxu0
  %v97 = vadd.f32 %v24, %v96
  %v98 = vpop.f32.mrb[0].mxu0
  %99 = vdwg.mxu0
  %v100 = vlaneseq
  %v101 = vand.u32 %v100, 127
  %vm102 = vcmp.lt.s32.totalorder %v101, 4
  %vm103 = vcmp.ge.s32.totalorder %v101, 36
  %vm104 = vcmp.lt.s32.totalorder %v101, 68
  %vm105 = vmand %vm103, %vm104
  %v106 = vsel %vm102, %v97, -3e+38
  %107 = vmax.xlane.f32.xlu0 %v106
  %v108 = vpop.xlane.xlu0 %107
  %v109 = vsub.f32 %v97, %v108
  %v110 = vsel %vm102, %v109, %v97
  %v111 = vmul.f32 %v110, 1.442695
  %v112 = vpow.pop %v111
  %v113 = vsel %vm102, %v112, 0.0
  %114 = vadd.xlane.f32.xlu0 %v113
  %v115 = vpop.xlane.xlu0 %114
  %v116 = vrcp.pop %v115
  %v117 = vmul.f32 1.0, %v116
  %v118 = vmul.f32 %v112, %v117
  %v119 = vsel %vm105, %v112, %v97
  %v120 = vsel %vm102, %v118, %v119
  %121 = vst [vmem:[%s3] sm:$0xff] %v120
  // Predicated region
  $region14: #{mdn_forward.1} parent=0 // pred_check
    _
  $region15: #{mdn_forward.1} parent=0 // pred_check_branch
    %123 = sbr.rel (0) target = $region17
  $region16: #{mdn_forward.1} parent=0 // pred_region
    _
  $region17: #{mdn_forward.1} parent=0 // pred_fallthru
    _
  // Predicated region
  $region18: #{mdn_forward.1} parent=0 // pred_check
    _
  $region19: #{mdn_forward.1} parent=0 // pred_check_branch
    %125 = sbr.rel (0) target = $region21
  $region20: #{mdn_forward.1} parent=0 // pred_region
    _
  $region21: #{mdn_forward.1} parent=0 // pred_fallthru
    _

</llo_original>
